<compile_context>
chip_gen: v5e
topology: v5e:2x2
jax: 0.10.0
libtpu: 0.0.40
codegen_flags: <defaults>
</compile_context>

<pallas_src>
import functools
import math

import jax
import jax.numpy as jnp
import numpy as np
from jax import lax
from jax.experimental import pallas as pl
from jax.experimental.pallas import tpu as pltpu


def _round_up(n, m):
    return ((n + m - 1) // m) * m


def _hist_kernel(x_ref, o_ref, acc_ref, *, half_scale, half_borders, chunk, n_chunks):
    # x_ref:   (R, TL)           packed-row x lane-tile slab of one batch element
    # o_ref:   (bins+1, R)       per-border / per-row sums, written on the last tile
    # acc_ref: (bins+1, R, 128)  lane-parallel f32 running sums
    t = pl.program_id(1)

    @pl.when(t == 0)
    def _init():
        acc_ref[...] = jnp.zeros_like(acc_ref)

    n_sub = chunk // 128

    def process(off):
        # One lane chunk: scale multiply hoisted out of the border loop; borders
        # are pre-halved/pre-scaled compile-time constants -> exactly one EUP push
        # (tanh) per border per vreg.
        y = x_ref[:, pl.ds(off, chunk)].astype(jnp.float32) * half_scale   # (R, chunk)
        for k, hb in enumerate(half_borders):
            tk = jnp.tanh(y - hb)                        # (R, chunk)  EUP
            s = tk[:, 0:128]                             # fold chunk -> 128 lanes (VPU)
            for m in range(1, n_sub):
                s = s + tk[:, m * 128:(m + 1) * 128]
            acc_ref[k] += s                              # one-vreg-row RMW per border

    if n_chunks == 1:
        process(0)
    else:
        def body(j, carry):
            process(pl.multiple_of(j * chunk, chunk))
            return carry
        lax.fori_loop(0, n_chunks, body, 0, unroll=(n_chunks <= 4))

    @pl.when(t == pl.num_programs(1) - 1)
    def _finalize():
        # Single cross-lane (XLU) reduce per border, once per batch element.
        o_ref[...] = jnp.sum(acc_ref[...], axis=-1).astype(o_ref.dtype)


def hist_forward(x, *, bins=20, scale_factor=5, eps=1e-05, hw_tile=8192):
    """x: (B, C, H, W) -> (B, bins*C), bins-major then channel (PyTorch Hist)."""
    del eps  # unused in the forward pass (kept for parity with the module)
    b, c, h, w = x.shape
    hw = h * w
    scale = float(scale_factor * bins)

    if bins != 256:
        bin_borders = np.linspace(0.0, 1.0, bins + 1)
    else:
        bin_borders = np.linspace(0.0 - 1.0 / 256 / 2, 1.0 + 1.0 / 256 / 2, bins + 1)
    # sigmoid(z) = 0.5*(1 + tanh(z/2)); the +1 cancels and the 0.5 hoists in the
    # adjacent-border difference, so only tanh(0.5*s*x - 0.5*s*b_k) is needed.
    half_scale = 0.5 * scale
    half_borders = tuple(float(half_scale * v) for v in bin_borders)  # compile-time

    # Sublane packing: (C, HW) -> (C*G, HW/G) so f32 vregs are sublane-full.
    g = 8 // math.gcd(c, 8)
    r = c * g                                     # multiple of 8 rows
    itemsize = x.dtype.itemsize

    # Lane-tile size from an explicit VMEM budget: double-buffered input block plus
    # the lane-parallel accumulator must fit v5e's 16 MiB default scoped VMEM.
    acc_bytes = (bins + 1) * r * 128 * 4
    vmem_budget = 12 * 1024 * 1024
    in_budget = max(vmem_budget - acc_bytes, 2 * r * 128 * itemsize)
    tl_cap = max(128, (in_budget // (2 * r * itemsize)) // 128 * 128)

    l_raw = -(-hw // g)                           # lanes per packed row (unpadded)
    tl = min(_round_up(l_raw, 128), _round_up(hw_tile, 128), tl_cap)
    n_t = pl.cdiv(l_raw, tl)
    l_total = n_t * tl
    hw_pad = g * l_total

    # In-kernel lane-chunk width: largest of {1024,512,256,128} dividing the tile.
    chunk = 128
    for cand in (1024, 512, 256):
        if tl % cand == 0:
            chunk = cand
            break
    n_chunks = tl // chunk

    x_flat = x.reshape(b, c, hw)
    if hw_pad != hw:
        # Huge pad value: tanh saturates to exactly 1.0 for every border, so
        # adjacent-border differences contribute 0; mean divides by true H*W below.
        x_flat = jnp.pad(x_flat, ((0, 0), (0, 0), (0, hw_pad - hw)),
                         constant_values=1e4)
    x_packed = x_flat.reshape(b, r, l_total)      # row index = c*G + g_sub

    kernel = functools.partial(
        _hist_kernel,
        half_scale=half_scale,
        half_borders=half_borders,
        chunk=chunk,
        n_chunks=n_chunks,
    )

    need = acc_bytes + 2 * r * tl * itemsize + (2 << 20)
    vmem_limit = None if need <= (16 << 20) else min(need, 64 << 20)

    cost = pl.CostEstimate(
        flops=int(3 * b * (bins + 1) * r * l_total),
        transcendentals=int(b * (bins + 1) * r * l_total),
        bytes_accessed=int(b * r * l_total * itemsize + b * (bins + 1) * r * 4),
    )

    # NOTE: on v7x only the leading "parallel" axis is sharded over the 2 TCs;
    # B >= 2 keeps both busy (for B == 1 one could split HW into two parallel halves).
    sums = pl.pallas_call(
        kernel,
        out_shape=jax.ShapeDtypeStruct((b, bins + 1, r), jnp.float32),
        grid_spec=pltpu.PrefetchScalarGridSpec(
            num_scalar_prefetch=0,
            grid=(b, n_t),
            in_specs=[pl.BlockSpec((None, r, tl), lambda i, t: (i, 0, t))],
            out_specs=pl.BlockSpec((None, bins + 1, r), lambda i, t: (i, 0, 0)),
            scratch_shapes=[pltpu.VMEM((bins + 1, r, 128), jnp.float32)],
        ),
        compiler_params=pltpu.CompilerParams(
            dimension_semantics=("parallel", "arbitrary"),
            vmem_limit_bytes=vmem_limit,
        ),
        cost_estimate=cost,
    )(x_packed)

    # Tiny finalize in XLA: fold G sub-rows back into channels, take adjacent-border
    # differences, apply the 0.5 tanh factor and the mean, flatten bins-major.
    tot = sums.reshape(b, bins + 1, c, g).sum(axis=-1)          # (B, bins+1, C)
    hist = (0.5 / float(hw)) * (tot[:, :bins, :] - tot[:, 1:, :])
    return hist.reshape(b, bins * c).astype(x.dtype)


def _hist_reference(x, *, bins=20, scale_factor=5):
    b, c, h, w = x.shape
    scale = float(scale_factor * bins)
    if bins != 256:
        bb = np.linspace(0.0, 1.0, bins + 1)
    else:
        bb = np.linspace(0.0 - 1.0 / 256 / 2, 1.0 + 1.0 / 256 / 2, bins + 1)
    left = jnp.asarray(bb[:-1], dtype=x.dtype).reshape(bins, 1, 1, 1, 1)
    right = jnp.asarray(bb[1:], dtype=x.dtype).reshape(bins, 1, 1, 1, 1)
    xr = jnp.broadcast_to(x[None], (bins, b, c, h, w))
    d = jax.nn.sigmoid(scale * (xr - left)) - jax.nn.sigmoid(scale * (xr - right))
    d = jnp.transpose(d, (1, 0, 2, 3, 4)).mean((3, 4))
    return d.reshape(b, bins * c)


if __name__ == "__main__":
    key = jax.random.PRNGKey(0)
    B, C, H, W = 2, 4, 16, 16
    x = jax.random.uniform(key, (B, C, H, W), dtype=jnp.float32)

    out = hist_forward(x, bins=20, scale_factor=5)
    out = jax.block_until_ready(out)

    ref = _hist_reference(x, bins=20, scale_factor=5)
    assert out.shape == (B, 20 * C), out.shape
    max_err = float(jnp.max(jnp.abs(out - ref)))
    # tanh-vs-sigmoid f32 lowering and scale reassociation differ at ~1e-6 level.
    assert max_err < 1e-4, max_err

    print("KERNEL_OK")
</pallas_src>

<mosaic_0001>
module attributes {stable_mosaic.version = 11 : i64} {
  func.func @_hist_kernel(%arg0: i32, %arg1: i32, %arg2: memref<1x8x128xf32, #tpu.memory_space<vmem>>, %arg3: memref<1x21x8xf32, #tpu.memory_space<vmem>>, %arg4: memref<21x8x128xf32, #tpu.memory_space<vmem>>) attributes {dimension_semantics = [#tpu.dimension_semantics<parallel>, #tpu.dimension_semantics<arbitrary>], iteration_bounds = array<i64: 2, 1>, scalar_prefetch = 0 : i64, scratch_operands = 1 : i64, tpu.core_type = #tpu.core_type<tc>, window_params = [{transform_indices = @transform_0, window_bounds = array<i64: 1, 8, 128>}, {transform_indices = @transform_1, window_bounds = array<i64: 1, 21, 8>}]} {
    %c0_i32 = arith.constant 0 : i32
    %0 = arith.cmpi eq, %arg1, %c0_i32 : i32
    %1 = arith.extui %0 : i1 to i32
    %c0_i32_0 = arith.constant 0 : i32
    %2 = arith.cmpi ne, %1, %c0_i32_0 : i32
    scf.if %2 {
      %cst_132 = arith.constant 0.000000e+00 : f32
      %199 = vector.broadcast %cst_132 : f32 to vector<21x8x128xf32>
      %c0_133 = arith.constant 0 : index
      %c0_134 = arith.constant 0 : index
      %c0_135 = arith.constant 0 : index
      %200 = vector.load %arg4[%c0_133, %c0_134, %c0_135] : memref<21x8x128xf32, #tpu.memory_space<vmem>>, vector<21x8x128xf32>
      tpu.vector_store %arg4[%c0_133, %c0_134, %c0_135], %199 {strides = array<i32>} : memref<21x8x128xf32, #tpu.memory_space<vmem>>, vector<21x8x128xf32>,
    } else {
    }
    %c0 = arith.constant 0 : index
    %c0_1 = arith.constant 0 : index
    %c0_2 = arith.constant 0 : index
    %3 = vector.load %arg2[%c0, %c0_1, %c0_2] : memref<1x8x128xf32, #tpu.memory_space<vmem>>, vector<1x8x128xf32>
    %4 = vector.shape_cast %3 : vector<1x8x128xf32> to vector<8x128xf32>
    %cst = arith.constant 5.000000e+01 : f32
    %5 = vector.broadcast %cst : f32 to vector<8x128xf32>
    %6 = arith.mulf %4, %5 : vector<8x128xf32>
    %cst_3 = arith.constant 0.000000e+00 : f32
    %7 = vector.broadcast %cst_3 : f32 to vector<8x128xf32>
    %8 = arith.subf %6, %7 : vector<8x128xf32>
    %9 = math.tanh %8 : vector<8x128xf32>
    %c0_4 = arith.constant 0 : index
    %c0_5 = arith.constant 0 : index
    %c0_6 = arith.constant 0 : index
    %10 = vector.load %arg4[%c0_4, %c0_5, %c0_6] : memref<21x8x128xf32, #tpu.memory_space<vmem>>, vector<1x8x128xf32>
    %11 = vector.shape_cast %10 : vector<1x8x128xf32> to vector<8x128xf32>
    %12 = arith.addf %11, %9 : vector<8x128xf32>
    %c0_7 = arith.constant 0 : index
    %c0_8 = arith.constant 0 : index
    %c0_9 = arith.constant 0 : index
    %13 = vector.load %arg4[%c0_7, %c0_8, %c0_9] : memref<21x8x128xf32, #tpu.memory_space<vmem>>, vector<1x8x128xf32>
    %14 = vector.shape_cast %13 : vector<1x8x128xf32> to vector<8x128xf32>
    %15 = vector.shape_cast %12 : vector<8x128xf32> to vector<1x8x128xf32>
    tpu.vector_store %arg4[%c0_7, %c0_8, %c0_9], %15 {strides = array<i32>} : memref<21x8x128xf32, #tpu.memory_space<vmem>>, vector<1x8x128xf32>,
    %cst_10 = arith.constant 2.500000e+00 : f32
    %16 = vector.broadcast %cst_10 : f32 to vector<8x128xf32>
    %17 = arith.subf %6, %16 : vector<8x128xf32>
    %18 = math.tanh %17 : vector<8x128xf32>
    %c1 = arith.constant 1 : index
    %c0_11 = arith.constant 0 : index
    %c0_12 = arith.constant 0 : index
    %19 = vector.load %arg4[%c1, %c0_11, %c0_12] : memref<21x8x128xf32, #tpu.memory_space<vmem>>, vector<1x8x128xf32>
    %20 = vector.shape_cast %19 : vector<1x8x128xf32> to vector<8x128xf32>
    %21 = arith.addf %20, %18 : vector<8x128xf32>
    %c1_13 = arith.constant 1 : index
    %c0_14 = arith.constant 0 : index
    %c0_15 = arith.constant 0 : index
    %22 = vector.load %arg4[%c1_13, %c0_14, %c0_15] : memref<21x8x128xf32, #tpu.memory_space<vmem>>, vector<1x8x128xf32>
    %23 = vector.shape_cast %22 : vector<1x8x128xf32> to vector<8x128xf32>
    %24 = vector.shape_cast %21 : vector<8x128xf32> to vector<1x8x128xf32>
    tpu.vector_store %arg4[%c1_13, %c0_14, %c0_15], %24 {strides = array<i32>} : memref<21x8x128xf32, #tpu.memory_space<vmem>>, vector<1x8x128xf32>,
    %cst_16 = arith.constant 5.000000e+00 : f32
    %25 = vector.broadcast %cst_16 : f32 to vector<8x128xf32>
    %26 = arith.subf %6, %25 : vector<8x128xf32>
    %27 = math.tanh %26 : vector<8x128xf32>
    %c2 = arith.constant 2 : index
    %c0_17 = arith.constant 0 : index
    %c0_18 = arith.constant 0 : index
    %28 = vector.load %arg4[%c2, %c0_17, %c0_18] : memref<21x8x128xf32, #tpu.memory_space<vmem>>, vector<1x8x128xf32>
    %29 = vector.shape_cast %28 : vector<1x8x128xf32> to vector<8x128xf32>
    %30 = arith.addf %29, %27 : vector<8x128xf32>
    %c2_19 = arith.constant 2 : index
    %c0_20 = arith.constant 0 : index
    %c0_21 = arith.constant 0 : index
    %31 = vector.load %arg4[%c2_19, %c0_20, %c0_21] : memref<21x8x128xf32, #tpu.memory_space<vmem>>, vector<1x8x128xf32>
    %32 = vector.shape_cast %31 : vector<1x8x128xf32> to vector<8x128xf32>
    %33 = vector.shape_cast %30 : vector<8x128xf32> to vector<1x8x128xf32>
    tpu.vector_store %arg4[%c2_19, %c0_20, %c0_21], %33 {strides = array<i32>} : memref<21x8x128xf32, #tpu.memory_space<vmem>>, vector<1x8x128xf32>,
    %cst_22 = arith.constant 7.500000e+00 : f32
    %34 = vector.broadcast %cst_22 : f32 to vector<8x128xf32>
    %35 = arith.subf %6, %34 : vector<8x128xf32>
    %36 = math.tanh %35 : vector<8x128xf32>
    %c3 = arith.constant 3 : index
    %c0_23 = arith.constant 0 : index
    %c0_24 = arith.constant 0 : index
    %37 = vector.load %arg4[%c3, %c0_23, %c0_24] : memref<21x8x128xf32, #tpu.memory_space<vmem>>, vector<1x8x128xf32>
    %38 = vector.shape_cast %37 : vector<1x8x128xf32> to vector<8x128xf32>
    %39 = arith.addf %38, %36 : vector<8x128xf32>
    %c3_25 = arith.constant 3 : index
    %c0_26 = arith.constant 0 : index
    %c0_27 = arith.constant 0 : index
    %40 = vector.load %arg4[%c3_25, %c0_26, %c0_27] : memref<21x8x128xf32, #tpu.memory_space<vmem>>, vector<1x8x128xf32>
    %41 = vector.shape_cast %40 : vector<1x8x128xf32> to vector<8x128xf32>
    %42 = vector.shape_cast %39 : vector<8x128xf32> to vector<1x8x128xf32>
    tpu.vector_store %arg4[%c3_25, %c0_26, %c0_27], %42 {strides = array<i32>} : memref<21x8x128xf32, #tpu.memory_space<vmem>>, vector<1x8x128xf32>,
    %cst_28 = arith.constant 1.000000e+01 : f32
    %43 = vector.broadcast %cst_28 : f32 to vector<8x128xf32>
    %44 = arith.subf %6, %43 : vector<8x128xf32>
    %45 = math.tanh %44 : vector<8x128xf32>
    %c4 = arith.constant 4 : index
    %c0_29 = arith.constant 0 : index
    %c0_30 = arith.constant 0 : index
    %46 = vector.load %arg4[%c4, %c0_29, %c0_30] : memref<21x8x128xf32, #tpu.memory_space<vmem>>, vector<1x8x128xf32>
    %47 = vector.shape_cast %46 : vector<1x8x128xf32> to vector<8x128xf32>
    %48 = arith.addf %47, %45 : vector<8x128xf32>
    %c4_31 = arith.constant 4 : index
    %c0_32 = arith.constant 0 : index
    %c0_33 = arith.constant 0 : index
    %49 = vector.load %arg4[%c4_31, %c0_32, %c0_33] : memref<21x8x128xf32, #tpu.memory_space<vmem>>, vector<1x8x128xf32>
    %50 = vector.shape_cast %49 : vector<1x8x128xf32> to vector<8x128xf32>
    %51 = vector.shape_cast %48 : vector<8x128xf32> to vector<1x8x128xf32>
    tpu.vector_store %arg4[%c4_31, %c0_32, %c0_33], %51 {strides = array<i32>} : memref<21x8x128xf32, #tpu.memory_space<vmem>>, vector<1x8x128xf32>,
    %cst_34 = arith.constant 1.250000e+01 : f32
    %52 = vector.broadcast %cst_34 : f32 to vector<8x128xf32>
    %53 = arith.subf %6, %52 : vector<8x128xf32>
    %54 = math.tanh %53 : vector<8x128xf32>
    %c5 = arith.constant 5 : index
    %c0_35 = arith.constant 0 : index
    %c0_36 = arith.constant 0 : index
    %55 = vector.load %arg4[%c5, %c0_35, %c0_36] : memref<21x8x128xf32, #tpu.memory_space<vmem>>, vector<1x8x128xf32>
    %56 = vector.shape_cast %55 : vector<1x8x128xf32> to vector<8x128xf32>
    %57 = arith.addf %56, %54 : vector<8x128xf32>
    %c5_37 = arith.constant 5 : index
    %c0_38 = arith.constant 0 : index
    %c0_39 = arith.constant 0 : index
    %58 = vector.load %arg4[%c5_37, %c0_38, %c0_39] : memref<21x8x128xf32, #tpu.memory_space<vmem>>, vector<1x8x128xf32>
    %59 = vector.shape_cast %58 : vector<1x8x128xf32> to vector<8x128xf32>
    %60 = vector.shape_cast %57 : vector<8x128xf32> to vector<1x8x128xf32>
    tpu.vector_store %arg4[%c5_37, %c0_38, %c0_39], %60 {strides = array<i32>} : memref<21x8x128xf32, #tpu.memory_space<vmem>>, vector<1x8x128xf32>,
    %cst_40 = arith.constant 1.500000e+01 : f32
    %61 = vector.broadcast %cst_40 : f32 to vector<8x128xf32>
    %62 = arith.subf %6, %61 : vector<8x128xf32>
    %63 = math.tanh %62 : vector<8x128xf32>
    %c6 = arith.constant 6 : index
    %c0_41 = arith.constant 0 : index
    %c0_42 = arith.constant 0 : index
    %64 = vector.load %arg4[%c6, %c0_41, %c0_42] : memref<21x8x128xf32, #tpu.memory_space<vmem>>, vector<1x8x128xf32>
    %65 = vector.shape_cast %64 : vector<1x8x128xf32> to vector<8x128xf32>
    %66 = arith.addf %65, %63 : vector<8x128xf32>
    %c6_43 = arith.constant 6 : index
    %c0_44 = arith.constant 0 : index
    %c0_45 = arith.constant 0 : index
    %67 = vector.load %arg4[%c6_43, %c0_44, %c0_45] : memref<21x8x128xf32, #tpu.memory_space<vmem>>, vector<1x8x128xf32>
    %68 = vector.shape_cast %67 : vector<1x8x128xf32> to vector<8x128xf32>
    %69 = vector.shape_cast %66 : vector<8x128xf32> to vector<1x8x128xf32>
    tpu.vector_store %arg4[%c6_43, %c0_44, %c0_45], %69 {strides = array<i32>} : memref<21x8x128xf32, #tpu.memory_space<vmem>>, vector<1x8x128xf32>,
    %cst_46 = arith.constant 1.750000e+01 : f32
    %70 = vector.broadcast %cst_46 : f32 to vector<8x128xf32>
    %71 = arith.subf %6, %70 : vector<8x128xf32>
    %72 = math.tanh %71 : vector<8x128xf32>
    %c7 = arith.constant 7 : index
    %c0_47 = arith.constant 0 : index
    %c0_48 = arith.constant 0 : index
    %73 = vector.load %arg4[%c7, %c0_47, %c0_48] : memref<21x8x128xf32, #tpu.memory_space<vmem>>, vector<1x8x128xf32>
    %74 = vector.shape_cast %73 : vector<1x8x128xf32> to vector<8x128xf32>
    %75 = arith.addf %74, %72 : vector<8x128xf32>
    %c7_49 = arith.constant 7 : index
    %c0_50 = arith.constant 0 : index
    %c0_51 = arith.constant 0 : index
    %76 = vector.load %arg4[%c7_49, %c0_50, %c0_51] : memref<21x8x128xf32, #tpu.memory_space<vmem>>, vector<1x8x128xf32>
    %77 = vector.shape_cast %76 : vector<1x8x128xf32> to vector<8x128xf32>
    %78 = vector.shape_cast %75 : vector<8x128xf32> to vector<1x8x128xf32>
    tpu.vector_store %arg4[%c7_49, %c0_50, %c0_51], %78 {strides = array<i32>} : memref<21x8x128xf32, #tpu.memory_space<vmem>>, vector<1x8x128xf32>,
    %cst_52 = arith.constant 2.000000e+01 : f32
    %79 = vector.broadcast %cst_52 : f32 to vector<8x128xf32>
    %80 = arith.subf %6, %79 : vector<8x128xf32>
    %81 = math.tanh %80 : vector<8x128xf32>
    %c8 = arith.constant 8 : index
    %c0_53 = arith.constant 0 : index
    %c0_54 = arith.constant 0 : index
    %82 = vector.load %arg4[%c8, %c0_53, %c0_54] : memref<21x8x128xf32, #tpu.memory_space<vmem>>, vector<1x8x128xf32>
    %83 = vector.shape_cast %82 : vector<1x8x128xf32> to vector<8x128xf32>
    %84 = arith.addf %83, %81 : vector<8x128xf32>
    %c8_55 = arith.constant 8 : index
    %c0_56 = arith.constant 0 : index
    %c0_57 = arith.constant 0 : index
    %85 = vector.load %arg4[%c8_55, %c0_56, %c0_57] : memref<21x8x128xf32, #tpu.memory_space<vmem>>, vector<1x8x128xf32>
    %86 = vector.shape_cast %85 : vector<1x8x128xf32> to vector<8x128xf32>
    %87 = vector.shape_cast %84 : vector<8x128xf32> to vector<1x8x128xf32>
    tpu.vector_store %arg4[%c8_55, %c0_56, %c0_57], %87 {strides = array<i32>} : memref<21x8x128xf32, #tpu.memory_space<vmem>>, vector<1x8x128xf32>,
    %cst_58 = arith.constant 2.250000e+01 : f32
    %88 = vector.broadcast %cst_58 : f32 to vector<8x128xf32>
    %89 = arith.subf %6, %88 : vector<8x128xf32>
    %90 = math.tanh %89 : vector<8x128xf32>
    %c9 = arith.constant 9 : index
    %c0_59 = arith.constant 0 : index
    %c0_60 = arith.constant 0 : index
    %91 = vector.load %arg4[%c9, %c0_59, %c0_60] : memref<21x8x128xf32, #tpu.memory_space<vmem>>, vector<1x8x128xf32>
    %92 = vector.shape_cast %91 : vector<1x8x128xf32> to vector<8x128xf32>
    %93 = arith.addf %92, %90 : vector<8x128xf32>
    %c9_61 = arith.constant 9 : index
    %c0_62 = arith.constant 0 : index
    %c0_63 = arith.constant 0 : index
    %94 = vector.load %arg4[%c9_61, %c0_62, %c0_63] : memref<21x8x128xf32, #tpu.memory_space<vmem>>, vector<1x8x128xf32>
    %95 = vector.shape_cast %94 : vector<1x8x128xf32> to vector<8x128xf32>
    %96 = vector.shape_cast %93 : vector<8x128xf32> to vector<1x8x128xf32>
    tpu.vector_store %arg4[%c9_61, %c0_62, %c0_63], %96 {strides = array<i32>} : memref<21x8x128xf32, #tpu.memory_space<vmem>>, vector<1x8x128xf32>,
    %cst_64 = arith.constant 2.500000e+01 : f32
    %97 = vector.broadcast %cst_64 : f32 to vector<8x128xf32>
    %98 = arith.subf %6, %97 : vector<8x128xf32>
    %99 = math.tanh %98 : vector<8x128xf32>
    %c10 = arith.constant 10 : index
    %c0_65 = arith.constant 0 : index
    %c0_66 = arith.constant 0 : index
    %100 = vector.load %arg4[%c10, %c0_65, %c0_66] : memref<21x8x128xf32, #tpu.memory_space<vmem>>, vector<1x8x128xf32>
    %101 = vector.shape_cast %100 : vector<1x8x128xf32> to vector<8x128xf32>
    %102 = arith.addf %101, %99 : vector<8x128xf32>
    %c10_67 = arith.constant 10 : index
    %c0_68 = arith.constant 0 : index
    %c0_69 = arith.constant 0 : index
    %103 = vector.load %arg4[%c10_67, %c0_68, %c0_69] : memref<21x8x128xf32, #tpu.memory_space<vmem>>, vector<1x8x128xf32>
    %104 = vector.shape_cast %103 : vector<1x8x128xf32> to vector<8x128xf32>
    %105 = vector.shape_cast %102 : vector<8x128xf32> to vector<1x8x128xf32>
    tpu.vector_store %arg4[%c10_67, %c0_68, %c0_69], %105 {strides = array<i32>} : memref<21x8x128xf32, #tpu.memory_space<vmem>>, vector<1x8x128xf32>,
    %cst_70 = arith.constant 2.750000e+01 : f32
    %106 = vector.broadcast %cst_70 : f32 to vector<8x128xf32>
    %107 = arith.subf %6, %106 : vector<8x128xf32>
    %108 = math.tanh %107 : vector<8x128xf32>
    %c11 = arith.constant 11 : index
    %c0_71 = arith.constant 0 : index
    %c0_72 = arith.constant 0 : index
    %109 = vector.load %arg4[%c11, %c0_71, %c0_72] : memref<21x8x128xf32, #tpu.memory_space<vmem>>, vector<1x8x128xf32>
    %110 = vector.shape_cast %109 : vector<1x8x128xf32> to vector<8x128xf32>
    %111 = arith.addf %110, %108 : vector<8x128xf32>
    %c11_73 = arith.constant 11 : index
    %c0_74 = arith.constant 0 : index
    %c0_75 = arith.constant 0 : index
    %112 = vector.load %arg4[%c11_73, %c0_74, %c0_75] : memref<21x8x128xf32, #tpu.memory_space<vmem>>, vector<1x8x128xf32>
    %113 = vector.shape_cast %112 : vector<1x8x128xf32> to vector<8x128xf32>
    %114 = vector.shape_cast %111 : vector<8x128xf32> to vector<1x8x128xf32>
    tpu.vector_store %arg4[%c11_73, %c0_74, %c0_75], %114 {strides = array<i32>} : memref<21x8x128xf32, #tpu.memory_space<vmem>>, vector<1x8x128xf32>,
    %cst_76 = arith.constant 3.000000e+01 : f32
    %115 = vector.broadcast %cst_76 : f32 to vector<8x128xf32>
    %116 = arith.subf %6, %115 : vector<8x128xf32>
    %117 = math.tanh %116 : vector<8x128xf32>
    %c12 = arith.constant 12 : index
    %c0_77 = arith.constant 0 : index
    %c0_78 = arith.constant 0 : index
    %118 = vector.load %arg4[%c12, %c0_77, %c0_78] : memref<21x8x128xf32, #tpu.memory_space<vmem>>, vector<1x8x128xf32>
    %119 = vector.shape_cast %118 : vector<1x8x128xf32> to vector<8x128xf32>
    %120 = arith.addf %119, %117 : vector<8x128xf32>
    %c12_79 = arith.constant 12 : index
    %c0_80 = arith.constant 0 : index
    %c0_81 = arith.constant 0 : index
    %121 = vector.load %arg4[%c12_79, %c0_80, %c0_81] : memref<21x8x128xf32, #tpu.memory_space<vmem>>, vector<1x8x128xf32>
    %122 = vector.shape_cast %121 : vector<1x8x128xf32> to vector<8x128xf32>
    %123 = vector.shape_cast %120 : vector<8x128xf32> to vector<1x8x128xf32>
    tpu.vector_store %arg4[%c12_79, %c0_80, %c0_81], %123 {strides = array<i32>} : memref<21x8x128xf32, #tpu.memory_space<vmem>>, vector<1x8x128xf32>,
    %cst_82 = arith.constant 3.250000e+01 : f32
    %124 = vector.broadcast %cst_82 : f32 to vector<8x128xf32>
    %125 = arith.subf %6, %124 : vector<8x128xf32>
    %126 = math.tanh %125 : vector<8x128xf32>
    %c13 = arith.constant 13 : index
    %c0_83 = arith.constant 0 : index
    %c0_84 = arith.constant 0 : index
    %127 = vector.load %arg4[%c13, %c0_83, %c0_84] : memref<21x8x128xf32, #tpu.memory_space<vmem>>, vector<1x8x128xf32>
    %128 = vector.shape_cast %127 : vector<1x8x128xf32> to vector<8x128xf32>
    %129 = arith.addf %128, %126 : vector<8x128xf32>
    %c13_85 = arith.constant 13 : index
    %c0_86 = arith.constant 0 : index
    %c0_87 = arith.constant 0 : index
    %130 = vector.load %arg4[%c13_85, %c0_86, %c0_87] : memref<21x8x128xf32, #tpu.memory_space<vmem>>, vector<1x8x128xf32>
    %131 = vector.shape_cast %130 : vector<1x8x128xf32> to vector<8x128xf32>
    %132 = vector.shape_cast %129 : vector<8x128xf32> to vector<1x8x128xf32>
    tpu.vector_store %arg4[%c13_85, %c0_86, %c0_87], %132 {strides = array<i32>} : memref<21x8x128xf32, #tpu.memory_space<vmem>>, vector<1x8x128xf32>,
    %cst_88 = arith.constant 3.500000e+01 : f32
    %133 = vector.broadcast %cst_88 : f32 to vector<8x128xf32>
    %134 = arith.subf %6, %133 : vector<8x128xf32>
    %135 = math.tanh %134 : vector<8x128xf32>
    %c14 = arith.constant 14 : index
    %c0_89 = arith.constant 0 : index
    %c0_90 = arith.constant 0 : index
    %136 = vector.load %arg4[%c14, %c0_89, %c0_90] : memref<21x8x128xf32, #tpu.memory_space<vmem>>, vector<1x8x128xf32>
    %137 = vector.shape_cast %136 : vector<1x8x128xf32> to vector<8x128xf32>
    %138 = arith.addf %137, %135 : vector<8x128xf32>
    %c14_91 = arith.constant 14 : index
    %c0_92 = arith.constant 0 : index
    %c0_93 = arith.constant 0 : index
    %139 = vector.load %arg4[%c14_91, %c0_92, %c0_93] : memref<21x8x128xf32, #tpu.memory_space<vmem>>, vector<1x8x128xf32>
    %140 = vector.shape_cast %139 : vector<1x8x128xf32> to vector<8x128xf32>
    %141 = vector.shape_cast %138 : vector<8x128xf32> to vector<1x8x128xf32>
    tpu.vector_store %arg4[%c14_91, %c0_92, %c0_93], %141 {strides = array<i32>} : memref<21x8x128xf32, #tpu.memory_space<vmem>>, vector<1x8x128xf32>,
    %cst_94 = arith.constant 3.750000e+01 : f32
    %142 = vector.broadcast %cst_94 : f32 to vector<8x128xf32>
    %143 = arith.subf %6, %142 : vector<8x128xf32>
    %144 = math.tanh %143 : vector<8x128xf32>
    %c15 = arith.constant 15 : index
    %c0_95 = arith.constant 0 : index
    %c0_96 = arith.constant 0 : index
    %145 = vector.load %arg4[%c15, %c0_95, %c0_96] : memref<21x8x128xf32, #tpu.memory_space<vmem>>, vector<1x8x128xf32>
    %146 = vector.shape_cast %145 : vector<1x8x128xf32> to vector<8x128xf32>
    %147 = arith.addf %146, %144 : vector<8x128xf32>
    %c15_97 = arith.constant 15 : index
    %c0_98 = arith.constant 0 : index
    %c0_99 = arith.constant 0 : index
    %148 = vector.load %arg4[%c15_97, %c0_98, %c0_99] : memref<21x8x128xf32, #tpu.memory_space<vmem>>, vector<1x8x128xf32>
    %149 = vector.shape_cast %148 : vector<1x8x128xf32> to vector<8x128xf32>
    %150 = vector.shape_cast %147 : vector<8x128xf32> to vector<1x8x128xf32>
    tpu.vector_store %arg4[%c15_97, %c0_98, %c0_99], %150 {strides = array<i32>} : memref<21x8x128xf32, #tpu.memory_space<vmem>>, vector<1x8x128xf32>,
    %cst_100 = arith.constant 4.000000e+01 : f32
    %151 = vector.broadcast %cst_100 : f32 to vector<8x128xf32>
    %152 = arith.subf %6, %151 : vector<8x128xf32>
    %153 = math.tanh %152 : vector<8x128xf32>
    %c16 = arith.constant 16 : index
    %c0_101 = arith.constant 0 : index
    %c0_102 = arith.constant 0 : index
    %154 = vector.load %arg4[%c16, %c0_101, %c0_102] : memref<21x8x128xf32, #tpu.memory_space<vmem>>, vector<1x8x128xf32>
    %155 = vector.shape_cast %154 : vector<1x8x128xf32> to vector<8x128xf32>
    %156 = arith.addf %155, %153 : vector<8x128xf32>
    %c16_103 = arith.constant 16 : index
    %c0_104 = arith.constant 0 : index
    %c0_105 = arith.constant 0 : index
    %157 = vector.load %arg4[%c16_103, %c0_104, %c0_105] : memref<21x8x128xf32, #tpu.memory_space<vmem>>, vector<1x8x128xf32>
    %158 = vector.shape_cast %157 : vector<1x8x128xf32> to vector<8x128xf32>
    %159 = vector.shape_cast %156 : vector<8x128xf32> to vector<1x8x128xf32>
    tpu.vector_store %arg4[%c16_103, %c0_104, %c0_105], %159 {strides = array<i32>} : memref<21x8x128xf32, #tpu.memory_space<vmem>>, vector<1x8x128xf32>,
    %cst_106 = arith.constant 4.250000e+01 : f32
    %160 = vector.broadcast %cst_106 : f32 to vector<8x128xf32>
    %161 = arith.subf %6, %160 : vector<8x128xf32>
    %162 = math.tanh %161 : vector<8x128xf32>
    %c17 = arith.constant 17 : index
    %c0_107 = arith.constant 0 : index
    %c0_108 = arith.constant 0 : index
    %163 = vector.load %arg4[%c17, %c0_107, %c0_108] : memref<21x8x128xf32, #tpu.memory_space<vmem>>, vector<1x8x128xf32>
    %164 = vector.shape_cast %163 : vector<1x8x128xf32> to vector<8x128xf32>
    %165 = arith.addf %164, %162 : vector<8x128xf32>
    %c17_109 = arith.constant 17 : index
    %c0_110 = arith.constant 0 : index
    %c0_111 = arith.constant 0 : index
    %166 = vector.load %arg4[%c17_109, %c0_110, %c0_111] : memref<21x8x128xf32, #tpu.memory_space<vmem>>, vector<1x8x128xf32>
    %167 = vector.shape_cast %166 : vector<1x8x128xf32> to vector<8x128xf32>
    %168 = vector.shape_cast %165 : vector<8x128xf32> to vector<1x8x128xf32>
    tpu.vector_store %arg4[%c17_109, %c0_110, %c0_111], %168 {strides = array<i32>} : memref<21x8x128xf32, #tpu.memory_space<vmem>>, vector<1x8x128xf32>,
    %cst_112 = arith.constant 4.500000e+01 : f32
    %169 = vector.broadcast %cst_112 : f32 to vector<8x128xf32>
    %170 = arith.subf %6, %169 : vector<8x128xf32>
    %171 = math.tanh %170 : vector<8x128xf32>
    %c18 = arith.constant 18 : index
    %c0_113 = arith.constant 0 : index
    %c0_114 = arith.constant 0 : index
    %172 = vector.load %arg4[%c18, %c0_113, %c0_114] : memref<21x8x128xf32, #tpu.memory_space<vmem>>, vector<1x8x128xf32>
    %173 = vector.shape_cast %172 : vector<1x8x128xf32> to vector<8x128xf32>
    %174 = arith.addf %173, %171 : vector<8x128xf32>
    %c18_115 = arith.constant 18 : index
    %c0_116 = arith.constant 0 : index
    %c0_117 = arith.constant 0 : index
    %175 = vector.load %arg4[%c18_115, %c0_116, %c0_117] : memref<21x8x128xf32, #tpu.memory_space<vmem>>, vector<1x8x128xf32>
    %176 = vector.shape_cast %175 : vector<1x8x128xf32> to vector<8x128xf32>
    %177 = vector.shape_cast %174 : vector<8x128xf32> to vector<1x8x128xf32>
    tpu.vector_store %arg4[%c18_115, %c0_116, %c0_117], %177 {strides = array<i32>} : memref<21x8x128xf32, #tpu.memory_space<vmem>>, vector<1x8x128xf32>,
    %cst_118 = arith.constant 4.750000e+01 : f32
    %178 = vector.broadcast %cst_118 : f32 to vector<8x128xf32>
    %179 = arith.subf %6, %178 : vector<8x128xf32>
    %180 = math.tanh %179 : vector<8x128xf32>
    %c19 = arith.constant 19 : index
    %c0_119 = arith.constant 0 : index
    %c0_120 = arith.constant 0 : index
    %181 = vector.load %arg4[%c19, %c0_119, %c0_120] : memref<21x8x128xf32, #tpu.memory_space<vmem>>, vector<1x8x128xf32>
    %182 = vector.shape_cast %181 : vector<1x8x128xf32> to vector<8x128xf32>
    %183 = arith.addf %182, %180 : vector<8x128xf32>
    %c19_121 = arith.constant 19 : index
    %c0_122 = arith.constant 0 : index
    %c0_123 = arith.constant 0 : index
    %184 = vector.load %arg4[%c19_121, %c0_122, %c0_123] : memref<21x8x128xf32, #tpu.memory_space<vmem>>, vector<1x8x128xf32>
    %185 = vector.shape_cast %184 : vector<1x8x128xf32> to vector<8x128xf32>
    %186 = vector.shape_cast %183 : vector<8x128xf32> to vector<1x8x128xf32>
    tpu.vector_store %arg4[%c19_121, %c0_122, %c0_123], %186 {strides = array<i32>} : memref<21x8x128xf32, #tpu.memory_space<vmem>>, vector<1x8x128xf32>,
    %cst_124 = arith.constant 5.000000e+01 : f32
    %187 = vector.broadcast %cst_124 : f32 to vector<8x128xf32>
    %188 = arith.subf %6, %187 : vector<8x128xf32>
    %189 = math.tanh %188 : vector<8x128xf32>
    %c20 = arith.constant 20 : index
    %c0_125 = arith.constant 0 : index
    %c0_126 = arith.constant 0 : index
    %190 = vector.load %arg4[%c20, %c0_125, %c0_126] : memref<21x8x128xf32, #tpu.memory_space<vmem>>, vector<1x8x128xf32>
    %191 = vector.shape_cast %190 : vector<1x8x128xf32> to vector<8x128xf32>
    %192 = arith.addf %191, %189 : vector<8x128xf32>
    %c20_127 = arith.constant 20 : index
    %c0_128 = arith.constant 0 : index
    %c0_129 = arith.constant 0 : index
    %193 = vector.load %arg4[%c20_127, %c0_128, %c0_129] : memref<21x8x128xf32, #tpu.memory_space<vmem>>, vector<1x8x128xf32>
    %194 = vector.shape_cast %193 : vector<1x8x128xf32> to vector<8x128xf32>
    %195 = vector.shape_cast %192 : vector<8x128xf32> to vector<1x8x128xf32>
    tpu.vector_store %arg4[%c20_127, %c0_128, %c0_129], %195 {strides = array<i32>} : memref<21x8x128xf32, #tpu.memory_space<vmem>>, vector<1x8x128xf32>,
    %c0_i32_130 = arith.constant 0 : i32
    %196 = arith.cmpi eq, %arg1, %c0_i32_130 : i32
    %197 = arith.extui %196 : i1 to i32
    %c0_i32_131 = arith.constant 0 : i32
    %198 = arith.cmpi ne, %197, %c0_i32_131 : i32
    scf.if %198 {
      %c0_132 = arith.constant 0 : index
      %c0_133 = arith.constant 0 : index
      %c0_134 = arith.constant 0 : index
      %199 = vector.load %arg4[%c0_132, %c0_133, %c0_134] : memref<21x8x128xf32, #tpu.memory_space<vmem>>, vector<21x8x128xf32>
      %cst_135 = arith.constant dense<0.000000e+00> : vector<21x8xf32>
      %200 = vector.multi_reduction <add>, %199, %cst_135 [2] : vector<21x8x128xf32> to vector<21x8xf32>
      %c0_136 = arith.constant 0 : index
      %c0_137 = arith.constant 0 : index
      %c0_138 = arith.constant 0 : index
      %201 = vector.load %arg3[%c0_136, %c0_137, %c0_138] : memref<1x21x8xf32, #tpu.memory_space<vmem>>, vector<1x21x8xf32>
      %202 = vector.shape_cast %201 : vector<1x21x8xf32> to vector<21x8xf32>
      %203 = vector.shape_cast %200 : vector<21x8xf32> to vector<1x21x8xf32>
      tpu.vector_store %arg3[%c0_136, %c0_137, %c0_138], %203 {strides = array<i32>} : memref<1x21x8xf32, #tpu.memory_space<vmem>>, vector<1x21x8xf32>,
    } else {
    }
    return
  }
  func.func @transform_0(%arg0: i32, %arg1: i32) -> (i32, i32, i32) {
    %c0_i32 = arith.constant 0 : i32
    %c0_i32_0 = arith.constant 0 : i32
    return %arg0, %c0_i32, %arg1 : i32, i32, i32
  }
  func.func @transform_1(%arg0: i32, %arg1: i32) -> (i32, i32, i32) {
    %c0_i32 = arith.constant 0 : i32
    %c0_i32_0 = arith.constant 0 : i32
    %c0_i32_1 = arith.constant 0 : i32
    return %arg0, %c0_i32, %c0_i32_0 : i32, i32, i32
  }
}

</mosaic_0001>

<llo_original>
// kernel: tpu_custom_call.1
$region0: #{tpu_custom_call.1}
  #allocation0 [shape = 'u32[]', space=smem, size = 0x4, offset = 0x4, fixed_abs, tag = 'smem constant byte address 0x4 - core index']
  #allocation1 [shape = 'u32[72,128]{1,0:T(1,128)}', space=vmem, size = 0x9000, scoped, tag = 'internal scratch']
  #allocation2 [shape = 'f32[21,8,128]{2,1,0:T(8,128)}', space=vmem, size = 0x15000, scoped, tag = 'scratch operand']
  %s0 = inlined_call_operand.hbm [shape: f32[2,8,128], index: 0, kind: input, shape index: {}]
  %s1 = inlined_call_operand.vmem [shape: f32[2,21,8], index: 1, kind: output, shape index: {}]
  %s2 = sld [smem:[#allocation0]]
  $region49: #{tpu_custom_call.1} parent=0
    _
  %s4 = ssub.s32 1, %s2
  %s5 = scalar_select 0, %s4, %s2
  $region1: #{tpu_custom_call.1} parent=0
    #allocation3 [shape = 'u8[8192]{0}', space=vmem, size = 0x2000, scoped, tag = 'input window, operand 0']
    #allocation4 [shape = 's32[2]{0}', space=sflag, size = 0x8, scoped, tag = 'scoped memory for tpu_custom_call.1']
    %6 = vsyncpa [#allocation4], 0
    %s7 = scalar_lea.sflag [#allocation4], 1
    %8 = vsyncpa %s7, 0
    loop: start=0, step=1, limit=4
    $region2: #{tpu_custom_call.1} parent=1 // loop_pre_header
      _
    $region3: #{tpu_custom_call.1} parent=1 // loop_header
      %s10 = sphi 0, %s14
      %p11 = scmp.ge.s32.totalorder %s10, 4
      %s17 = sphi 0, %s29
      %s18 = sphi 0, %s25
      %s19 = sphi 0, %s17
      %s20 = sphi 0, %s18
      %s21 = sphi 0, %s19
      %s22 = sphi 0, %s20
      %s34 = sphi 0, %s36
      %s37 = sphi 0, %s34
      %s38 = sphi 0, %s37
      %s54 = sphi 0, %s38
      %s60 = sphi 0, %s62
      %s63 = sphi 0, %s60
      %s64 = sphi 0, %s63
      %s80 = sphi 0, %s64
    $region4: #{tpu_custom_call.1} parent=1 // loop_header_branch
      %13 = sbr.rel (%p11) target = $region8
    $region5: #{tpu_custom_call.1} parent=1 // loop_body
      %s15 = ssub.s32 %s10, 1
      %s16 = ssub.s32 %s10, 2
      %s23 = sadd.s32 1, %s18
      %p24 = scmp.ge.s32.totalorder %s23, 1
      %s25 = scalar_select %p24, 0, %s23
      %s26 = sadd.s32 1, %s17
      %s27 = scalar_select %p24, %s26, %s17
      %p28 = scmp.ge.s32.totalorder %s27, 2
      %s29 = scalar_select %p28, 0, %s27
      %s30 = ssub.s32 %s17, %s29
      %s31 = ssub.s32 %s18, %s25
      %s32 = sor.u32 %s30, %s31
      %p33 = scmp.eq.s32.totalorder %s32, 0
      %s35 = sadd.s32 %s34, 1
      %s36 = scalar_select %p33, %s34, %s35
      %p39 = pneg %p33
      %p40 = scmp.eq.s32.totalorder %s10, 1
      %p41 = por %p39, %p40
      %p42 = scmp.ne.s32.totalorder %s34, %s37
      %p43 = scmp.eq.s32.totalorder %s10, 0
      %p44 = por %p42, %p43
      %p45 = scmp.ne.s32.totalorder %s34, %s37
      %p46 = scmp.eq.s32.totalorder %s15, 1
      %p47 = por %p45, %p46
      %p48 = scmp.ne.s32.totalorder %s37, %s38
      %p49 = scmp.eq.s32.totalorder %s15, 0
      %p50 = por %p48, %p49
      %p51 = scmp.ne.s32.totalorder %s37, %s38
      %p52 = scmp.eq.s32.totalorder %s16, 1
      %p53 = por %p51, %p52
      %p55 = scmp.ne.s32.totalorder %s38, %s54
      %p56 = scmp.eq.s32.totalorder %s16, 0
      %p57 = por %p55, %p56
      %s58 = ssub.s32 %s17, %s29
      %p59 = scmp.eq.s32.totalorder %s58, 0
      %s61 = sadd.s32 %s60, 1
      %s62 = scalar_select %p59, %s60, %s61
      %p65 = pneg %p59
      %p66 = scmp.eq.s32.totalorder %s10, 1
      %p67 = por %p65, %p66
      %p68 = scmp.ne.s32.totalorder %s60, %s63
      %p69 = scmp.eq.s32.totalorder %s10, 0
      %p70 = por %p68, %p69
      %p71 = scmp.ne.s32.totalorder %s60, %s63
      %p72 = scmp.eq.s32.totalorder %s15, 1
      %p73 = por %p71, %p72
      %p74 = scmp.ne.s32.totalorder %s63, %s64
      %p75 = scmp.eq.s32.totalorder %s15, 0
      %p76 = por %p74, %p75
      %p77 = scmp.ne.s32.totalorder %s63, %s64
      %p78 = scmp.eq.s32.totalorder %s16, 1
      %p79 = por %p77, %p78
      %p81 = scmp.ne.s32.totalorder %s64, %s80
      %p82 = scmp.eq.s32.totalorder %s16, 0
      %p83 = por %p81, %p82
      %p84 = scmp.le.s32.totalorder 1, %s10
      %p85 = scmp.lt.s32.totalorder %s10, 3
      %p86 = pnand %p84, %p85
      %p87 = pneg %p86
      // Predicated region
      $region9: #{tpu_custom_call.1} parent=5 // pred_check
        _
      $region10: #{tpu_custom_call.1} parent=5 // pred_check_branch
        %89 = sbr.rel (%p86) target = $region12
      $region11: #{tpu_custom_call.1} parent=5 // pred_region
        %s90 = ssub.s32 %s10, 1
      $region12: #{tpu_custom_call.1} parent=5 // pred_fallthru
        _
      %p91 = scmp.lt.s32.totalorder %s10, 2
      // Predicated region
      $region13: #{tpu_custom_call.1} parent=5 // pred_check
        %p92 = pneg %p91
      $region14: #{tpu_custom_call.1} parent=5 // pred_check_branch
        %94 = sbr.rel (%p92) target = $region16
      $region15: #{tpu_custom_call.1} parent=5 // pred_region
        // Predicated region
        $region17: #{tpu_custom_call.1} parent=15 // pred_check
          %p95 = pneg %p44
        $region18: #{tpu_custom_call.1} parent=15 // pred_check_branch
          %97 = sbr.rel (%p95) target = $region20
        $region19: #{tpu_custom_call.1} parent=15 // pred_region
          %s98 = sand.u32 %s34, 1
          %s99 = scalar_lea.sflag [#allocation4], %s98
          %s100 = sand.u32 %s34, 1
          %s101 = smul.addr %s100, 8
          %s102 = scalar_lea.vmem [#allocation3], %s101
          %104 = vsyncadd %s99, 0
          %s105 = sadd.s32 %s18, %s17
          %s106 = smul.addr %s105, 8
          %s107 = scalar_lea.hbm %s0, %s106
          %s109 = sshll.u32 %s107, 4
          %s110 = int_to_ptr.hbm [resolvable:$true] %s109
          %s111 = sshll.u32 %s102, 4
          %s112 = int_to_ptr.vmem [resolvable:$true] %s111
          %114 = dma.hbm_to_vmem [thread:$0]  %s110, 128, %s112, %s99
        $region20: #{tpu_custom_call.1} parent=15 // pred_fallthru
          _
      $region16: #{tpu_custom_call.1} parent=5 // pred_fallthru
        _
      %p115 = scmp.le.s32.totalorder 1, %s10
      %p116 = scmp.lt.s32.totalorder %s10, 3
      %p117 = pnand %p115, %p116
      %p118 = pneg %p117
      // Predicated region
      $region21: #{tpu_custom_call.1} parent=5 // pred_check
        _
      $region22: #{tpu_custom_call.1} parent=5 // pred_check_branch
        %120 = sbr.rel (%p117) target = $region24
      $region23: #{tpu_custom_call.1} parent=5 // pred_region
        %s121 = ssub.s32 %s10, 1
        %s122 = sand.u32 %s37, 1
        %s123 = scalar_lea.sflag [#allocation4], %s122
        %s124 = sand.u32 %s37, 1
        %s125 = smul.addr %s124, 8
        %s126 = scalar_lea.vmem [#allocation3], %s125
        // Predicated region
        $region25: #{tpu_custom_call.1} parent=23 // pred_check
          %p127 = pneg %p50
        $region26: #{tpu_custom_call.1} parent=23 // pred_check_branch
          %129 = sbr.rel (%p127) target = $region28
        $region27: #{tpu_custom_call.1} parent=23 // pred_region
          %131 = dma.done %s123, 128
        $region28: #{tpu_custom_call.1} parent=23 // pred_fallthru
          _
        %s132 = sand.u32 %s37, 1
        %s133 = scalar_lea.sflag [#allocation4], %s132
        %s134 = sand.u32 %s37, 1
        %s135 = smul.addr %s134, 8
        %s136 = scalar_lea.vmem [#allocation3], %s135
        %p137 = pneg %p50
        %p138 = pneg %p47
        %p139 = pneg %p76
        %p140 = pneg %p73
        %p141 = scmp.lt.s32.totalorder %s19, 1
        %s142 = scalar_select %p141, %s19, 1
        %s143 = smul.addr %s142, 3
        %s144 = smul.addr %s143, 8
        %s145 = scalar_lea.vmem %s1, %s144
        %p146 = scmp.lt.s32.totalorder %s19, 1
        %s147 = scalar_select %p146, %s19, 1
        %s148 = smul.addr %s147, 3
        %s149 = smul.addr %s148, 8
        %s150 = scalar_lea.vmem %s1, %s149
        %p151 = scmp.eq.s32.totalorder %s20, 0
        // Predicated region
        $region29: #{tpu_custom_call.1} parent=23 // pred_check
          %p152 = pneg %p151
        $region30: #{tpu_custom_call.1} parent=23 // pred_check_branch
          %154 = sbr.rel (%p152) target = $region32
        $region31: #{tpu_custom_call.1} parent=23 // pred_region
          %155 = vst [vmem:[#allocation2] sm:$0xff] 0.0
          %156 = vst [vmem:[#allocation2 + $0x8] sm:$0xff] 0.0
          %157 = vst [vmem:[#allocation2 + $0x10] sm:$0xff] 0.0
          %158 = vst [vmem:[#allocation2 + $0x18] sm:$0xff] 0.0
          %159 = vst [vmem:[#allocation2 + $0x20] sm:$0xff] 0.0
          %160 = vst [vmem:[#allocation2 + $0x28] sm:$0xff] 0.0
          %161 = vst [vmem:[#allocation2 + $0x30] sm:$0xff] 0.0
          %162 = vst [vmem:[#allocation2 + $0x38] sm:$0xff] 0.0
          %163 = vst [vmem:[#allocation2 + $0x40] sm:$0xff] 0.0
          %164 = vst [vmem:[#allocation2 + $0x48] sm:$0xff] 0.0
          %165 = vst [vmem:[#allocation2 + $0x50] sm:$0xff] 0.0
          %166 = vst [vmem:[#allocation2 + $0x58] sm:$0xff] 0.0
          %167 = vst [vmem:[#allocation2 + $0x60] sm:$0xff] 0.0
          %168 = vst [vmem:[#allocation2 + $0x68] sm:$0xff] 0.0
          %169 = vst [vmem:[#allocation2 + $0x70] sm:$0xff] 0.0
          %170 = vst [vmem:[#allocation2 + $0x78] sm:$0xff] 0.0
          %171 = vst [vmem:[#allocation2 + $0x80] sm:$0xff] 0.0
          %172 = vst [vmem:[#allocation2 + $0x88] sm:$0xff] 0.0
          %173 = vst [vmem:[#allocation2 + $0x90] sm:$0xff] 0.0
          %174 = vst [vmem:[#allocation2 + $0x98] sm:$0xff] 0.0
          %175 = vst [vmem:[#allocation2 + $0xa0] sm:$0xff] 0.0
        $region32: #{tpu_custom_call.1} parent=23 // pred_fallthru
          _
        %v176 = vld [vmem:[%s126] sm:$0xff]
        %v177 = vmul.f32 %v176, 50.0
        %v178 = vtanh.pop %v177
        %v179 = vld [vmem:[#allocation2] sm:$0xff]
        %v180 = vadd.f32 %v179, %v178
        %181 = vst [vmem:[#allocation2] sm:$0xff] %v180
        %v182 = vsub.f32 %v177, 2.5
        %v183 = vtanh.pop %v182
        %s184 = scalar_lea.vmem [#allocation2], 8
        %v185 = vld [vmem:[%s184] sm:$0xff]
        %v186 = vadd.f32 %v185, %v183
        %187 = vst [vmem:[%s184] sm:$0xff] %v186
        %v188 = vsub.f32 %v177, 5.0
        %v189 = vtanh.pop %v188
        %s190 = scalar_lea.vmem [#allocation2], 16
        %v191 = vld [vmem:[%s190] sm:$0xff]
        %v192 = vadd.f32 %v191, %v189
        %193 = vst [vmem:[%s190] sm:$0xff] %v192
        %v194 = vsub.f32 %v177, 7.5
        %v195 = vtanh.pop %v194
        %s196 = scalar_lea.vmem [#allocation2], 24
        %v197 = vld [vmem:[%s196] sm:$0xff]
        %v198 = vadd.f32 %v197, %v195
        %199 = vst [vmem:[%s196] sm:$0xff] %v198
        %v200 = vsub.f32 %v177, 10.0
        %v201 = vtanh.pop %v200
        %s202 = scalar_lea.vmem [#allocation2], 32
        %v203 = vld [vmem:[%s202] sm:$0xff]
        %v204 = vadd.f32 %v203, %v201
        %205 = vst [vmem:[%s202] sm:$0xff] %v204
        %v206 = vsub.f32 %v177, 12.5
        %v207 = vtanh.pop %v206
        %s208 = scalar_lea.vmem [#allocation2], 40
        %v209 = vld [vmem:[%s208] sm:$0xff]
        %v210 = vadd.f32 %v209, %v207
        %211 = vst [vmem:[%s208] sm:$0xff] %v210
        %v212 = vsub.f32 %v177, 15.0
        %v213 = vtanh.pop %v212
        %s214 = scalar_lea.vmem [#allocation2], 48
        %v215 = vld [vmem:[%s214] sm:$0xff]
        %v216 = vadd.f32 %v215, %v213
        %217 = vst [vmem:[%s214] sm:$0xff] %v216
        %v218 = vsub.f32 %v177, 17.5
        %v219 = vtanh.pop %v218
        %s220 = scalar_lea.vmem [#allocation2], 56
        %v221 = vld [vmem:[%s220] sm:$0xff]
        %v222 = vadd.f32 %v221, %v219
        %223 = vst [vmem:[%s220] sm:$0xff] %v222
        %v224 = vsub.f32 %v177, 20.0
        %v225 = vtanh.pop %v224
        %s226 = scalar_lea.vmem [#allocation2], 64
        %v227 = vld [vmem:[%s226] sm:$0xff]
        %v228 = vadd.f32 %v227, %v225
        %229 = vst [vmem:[%s226] sm:$0xff] %v228
        %v230 = vsub.f32 %v177, 22.5
        %v231 = vtanh.pop %v230
        %s232 = scalar_lea.vmem [#allocation2], 72
        %v233 = vld [vmem:[%s232] sm:$0xff]
        %v234 = vadd.f32 %v233, %v231
        %235 = vst [vmem:[%s232] sm:$0xff] %v234
        %v236 = vsub.f32 %v177, 25.0
        %v237 = vtanh.pop %v236
        %s238 = scalar_lea.vmem [#allocation2], 80
        %v239 = vld [vmem:[%s238] sm:$0xff]
        %v240 = vadd.f32 %v239, %v237
        %241 = vst [vmem:[%s238] sm:$0xff] %v240
        %v242 = vsub.f32 %v177, 27.5
        %v243 = vtanh.pop %v242
        %s244 = scalar_lea.vmem [#allocation2], 88
        %v245 = vld [vmem:[%s244] sm:$0xff]
        %v246 = vadd.f32 %v245, %v243
        %247 = vst [vmem:[%s244] sm:$0xff] %v246
        %v248 = vsub.f32 %v177, 30.0
        %v249 = vtanh.pop %v248
        %s250 = scalar_lea.vmem [#allocation2], 96
        %v251 = vld [vmem:[%s250] sm:$0xff]
        %v252 = vadd.f32 %v251, %v249
        %253 = vst [vmem:[%s250] sm:$0xff] %v252
        %v254 = vsub.f32 %v177, 32.5
        %v255 = vtanh.pop %v254
        %s256 = scalar_lea.vmem [#allocation2], 104
        %v257 = vld [vmem:[%s256] sm:$0xff]
        %v258 = vadd.f32 %v257, %v255
        %259 = vst [vmem:[%s256] sm:$0xff] %v258
        %v260 = vsub.f32 %v177, 35.0
        %v261 = vtanh.pop %v260
        %s262 = scalar_lea.vmem [#allocation2], 112
        %v263 = vld [vmem:[%s262] sm:$0xff]
        %v264 = vadd.f32 %v263, %v261
        %265 = vst [vmem:[%s262] sm:$0xff] %v264
        %v266 = vsub.f32 %v177, 37.5
        %v267 = vtanh.pop %v266
        %s268 = scalar_lea.vmem [#allocation2], 120
        %v269 = vld [vmem:[%s268] sm:$0xff]
        %v270 = vadd.f32 %v269, %v267
        %271 = vst [vmem:[%s268] sm:$0xff] %v270
        %v272 = vsub.f32 %v177, 40.0
        %v273 = vtanh.pop %v272
        %s274 = scalar_lea.vmem [#allocation2], 128
        %v275 = vld [vmem:[%s274] sm:$0xff]
        %v276 = vadd.f32 %v275, %v273
        %277 = vst [vmem:[%s274] sm:$0xff] %v276
        %v278 = vsub.f32 %v177, 42.5
        %v279 = vtanh.pop %v278
        %s280 = scalar_lea.vmem [#allocation2], 136
        %v281 = vld [vmem:[%s280] sm:$0xff]
        %v282 = vadd.f32 %v281, %v279
        %283 = vst [vmem:[%s280] sm:$0xff] %v282
        %v284 = vsub.f32 %v177, 45.0
        %v285 = vtanh.pop %v284
        %s286 = scalar_lea.vmem [#allocation2], 144
        %v287 = vld [vmem:[%s286] sm:$0xff]
        %v288 = vadd.f32 %v287, %v285
        %289 = vst [vmem:[%s286] sm:$0xff] %v288
        %v290 = vsub.f32 %v177, 47.5
        %v291 = vtanh.pop %v290
        %s292 = scalar_lea.vmem [#allocation2], 152
        %v293 = vld [vmem:[%s292] sm:$0xff]
        %v294 = vadd.f32 %v293, %v291
        %295 = vst [vmem:[%s292] sm:$0xff] %v294
        %v296 = vsub.f32 %v177, 50.0
        %v297 = vtanh.pop %v296
        %s298 = scalar_lea.vmem [#allocation2], 160
        %v299 = vld [vmem:[%s298] sm:$0xff]
        %v300 = vadd.f32 %v299, %v297
        %301 = vst [vmem:[%s298] sm:$0xff] %v300
        // Predicated region
        $region33: #{tpu_custom_call.1} parent=23 // pred_check
          %p302 = pneg %p151
        $region34: #{tpu_custom_call.1} parent=23 // pred_check_branch
          %304 = sbr.rel (%p302) target = $region36
        $region35: #{tpu_custom_call.1} parent=23 // pred_region
          %v305 = vld [vmem:[#allocation2] sm:$0xff]
          %v306 = vld [vmem:[#allocation2 + $0x8] sm:$0xff]
          %v307 = vld [vmem:[#allocation2 + $0x10] sm:$0xff]
          %v308 = vld [vmem:[#allocation2 + $0x18] sm:$0xff]
          %v309 = vld [vmem:[#allocation2 + $0x20] sm:$0xff]
          %v310 = vld [vmem:[#allocation2 + $0x28] sm:$0xff]
          %v311 = vld [vmem:[#allocation2 + $0x30] sm:$0xff]
          %v312 = vld [vmem:[#allocation2 + $0x38] sm:$0xff]
          %v313 = vld [vmem:[#allocation2 + $0x40] sm:$0xff]
          %v314 = vld [vmem:[#allocation2 + $0x48] sm:$0xff]
          %v315 = vld [vmem:[#allocation2 + $0x50] sm:$0xff]
          %v316 = vld [vmem:[#allocation2 + $0x58] sm:$0xff]
          %v317 = vld [vmem:[#allocation2 + $0x60] sm:$0xff]
          %v318 = vld [vmem:[#allocation2 + $0x68] sm:$0xff]
          %v319 = vld [vmem:[#allocation2 + $0x70] sm:$0xff]
          %v320 = vld [vmem:[#allocation2 + $0x78] sm:$0xff]
          %v321 = vld [vmem:[#allocation2 + $0x80] sm:$0xff]
          %v322 = vld [vmem:[#allocation2 + $0x88] sm:$0xff]
          %v323 = vld [vmem:[#allocation2 + $0x90] sm:$0xff]
          %v324 = vld [vmem:[#allocation2 + $0x98] sm:$0xff]
          %v325 = vld [vmem:[#allocation2 + $0xa0] sm:$0xff]
          %326 = vadd.xlane.f32.xlu0 %v305
          %v327 = vpop.xlane.xlu0 %326
          %328 = vadd.xlane.f32.xlu0 %v306
          %v329 = vpop.xlane.xlu0 %328
          %330 = vadd.xlane.f32.xlu0 %v307
          %v331 = vpop.xlane.xlu0 %330
          %332 = vadd.xlane.f32.xlu0 %v308
          %v333 = vpop.xlane.xlu0 %332
          %334 = vadd.xlane.f32.xlu0 %v309
          %v335 = vpop.xlane.xlu0 %334
          %336 = vadd.xlane.f32.xlu0 %v310
          %v337 = vpop.xlane.xlu0 %336
          %338 = vadd.xlane.f32.xlu0 %v311
          %v339 = vpop.xlane.xlu0 %338
          %340 = vadd.xlane.f32.xlu0 %v312
          %v341 = vpop.xlane.xlu0 %340
          %342 = vadd.xlane.f32.xlu0 %v313
          %v343 = vpop.xlane.xlu0 %342
          %344 = vadd.xlane.f32.xlu0 %v314
          %v345 = vpop.xlane.xlu0 %344
          %346 = vadd.xlane.f32.xlu0 %v315
          %v347 = vpop.xlane.xlu0 %346
          %348 = vadd.xlane.f32.xlu0 %v316
          %v349 = vpop.xlane.xlu0 %348
          %350 = vadd.xlane.f32.xlu0 %v317
          %v351 = vpop.xlane.xlu0 %350
          %352 = vadd.xlane.f32.xlu0 %v318
          %v353 = vpop.xlane.xlu0 %352
          %354 = vadd.xlane.f32.xlu0 %v319
          %v355 = vpop.xlane.xlu0 %354
          %356 = vadd.xlane.f32.xlu0 %v320
          %v357 = vpop.xlane.xlu0 %356
          %358 = vadd.xlane.f32.xlu0 %v321
          %v359 = vpop.xlane.xlu0 %358
          %360 = vadd.xlane.f32.xlu0 %v322
          %v361 = vpop.xlane.xlu0 %360
          %362 = vadd.xlane.f32.xlu0 %v323
          %v363 = vpop.xlane.xlu0 %362
          %364 = vadd.xlane.f32.xlu0 %v324
          %v365 = vpop.xlane.xlu0 %364
          %366 = vadd.xlane.f32.xlu0 %v325
          %v367 = vpop.xlane.xlu0 %366
          %v389 = vlaneseq
          %v390 = vand.u32 %v389, 127
          %v391 = vperm.slane %v327, %v390
          %v392 = vperm.slane %v329, %v390
          %v393 = vperm.slane %v331, %v390
          %v394 = vperm.slane %v333, %v390
          %v395 = vperm.slane %v335, %v390
          %v396 = vperm.slane %v337, %v390
          %v397 = vperm.slane %v339, %v390
          %v398 = vperm.slane %v341, %v390
          %v399 = vperm.slane %v343, %v390
          %v400 = vperm.slane %v345, %v390
          %v401 = vperm.slane %v347, %v390
          %v402 = vperm.slane %v349, %v390
          %v403 = vperm.slane %v351, %v390
          %v404 = vperm.slane %v353, %v390
          %v405 = vperm.slane %v355, %v390
          %v406 = vperm.slane %v357, %v390
          %v407 = vperm.slane %v359, %v390
          %v408 = vperm.slane %v361, %v390
          %v409 = vperm.slane %v363, %v390
          %v410 = vperm.slane %v365, %v390
          %v411 = vperm.slane %v367, %v390
          %vm412 = vcmask 1041409
          %v413 = vsel %vm412, %v392, %v391
          %vm414 = vcmask 1042434
          %v415 = vsel %vm414, %v393, %v413
          %vm416 = vcmask 1043459
          %v417 = vsel %vm416, %v394, %v415
          %vm418 = vcmask 1044484
          %v419 = vsel %vm418, %v395, %v417
          %vm420 = vcmask 1045509
          %v421 = vsel %vm420, %v396, %v419
          %vm422 = vcmask 1046534
          %v423 = vsel %vm422, %v397, %v421
          %vm424 = vcmask 1047559
          %v425 = vsel %vm424, %v398, %v423
          %v426 = vsel %vm412, %v400, %v399
          %v427 = vsel %vm414, %v401, %v426
          %v428 = vsel %vm416, %v402, %v427
          %v429 = vsel %vm418, %v403, %v428
          %v430 = vsel %vm420, %v404, %v429
          %v431 = vsel %vm422, %v405, %v430
          %v432 = vsel %vm424, %v406, %v431
          %v433 = vsel %vm412, %v408, %v407
          %v434 = vsel %vm414, %v409, %v433
          %v435 = vsel %vm416, %v410, %v434
          %v436 = vsel %vm418, %v411, %v435
          %vm440 = vcmask 64512
          %441 = vst.msk [vmem:[%s150] sm:$0xff] %vm440, %v425
          %442 = vst.msk [vmem:[%s150 + $0x8] sm:$0xff] %vm440, %v432
          %vm443 = vcmask 61440
          %444 = vst.msk [vmem:[%s150 + $0x10] sm:$0x1f] %vm443, %v436
        $region36: #{tpu_custom_call.1} parent=23 // pred_fallthru
          _
        %p445 = scmp.lt.s32.totalorder %s19, 1
        %s446 = scalar_select %p445, %s19, 1
        %s447 = smul.addr %s446, 3
        %s448 = smul.addr %s447, 8
        %s449 = scalar_lea.vmem %s1, %s448
        // Predicated region
        $region37: #{tpu_custom_call.1} parent=23 // pred_check
          %p450 = pneg %p73
        $region38: #{tpu_custom_call.1} parent=23 // pred_check_branch
          %452 = sbr.rel (%p450) target = $region40
        $region39: #{tpu_custom_call.1} parent=23 // pred_region
          _
        $region40: #{tpu_custom_call.1} parent=23 // pred_fallthru
          _
      $region24: #{tpu_custom_call.1} parent=5 // pred_fallthru
        _
      %p453 = scmp.le.s32.totalorder 2, %s10
      // Predicated region
      $region41: #{tpu_custom_call.1} parent=5 // pred_check
        %p454 = pneg %p453
      $region42: #{tpu_custom_call.1} parent=5 // pred_check_branch
        %456 = sbr.rel (%p454) target = $region44
      $region43: #{tpu_custom_call.1} parent=5 // pred_region
        %s457 = ssub.s32 %s10, 2
        // Predicated region
        $region45: #{tpu_custom_call.1} parent=43 // pred_check
          %p458 = pneg %p79
        $region46: #{tpu_custom_call.1} parent=43 // pred_check_branch
          %460 = sbr.rel (%p458) target = $region48
        $region47: #{tpu_custom_call.1} parent=43 // pred_region
          %p461 = scmp.lt.s32.totalorder %s21, 1
          %s462 = scalar_select %p461, %s21, 1
          %s463 = smul.addr %s462, 3
          %s464 = smul.addr %s463, 8
          %s465 = scalar_lea.vmem %s1, %s464
        $region48: #{tpu_custom_call.1} parent=43 // pred_fallthru
          _
      $region44: #{tpu_custom_call.1} parent=5 // pred_fallthru
        _
    $region6: #{tpu_custom_call.1} parent=1 // loop_footer
      %s14 = sadd.s32 1, %s10
    $region7: #{tpu_custom_call.1} parent=1 // loop_footer_branch
      %9 = sbr.rel target = $region3
    $region8: #{tpu_custom_call.1} parent=1 // loop_exit
      _
    %466 = vsyncpa [#allocation4], 1
    %s467 = scalar_lea.sflag [#allocation4], 1
    %468 = vsyncpa %s467, 1

</llo_original>
